<compile_context>
chip_gen: v6e
topology: v6e:2x2x1
jax: 0.10.0
libtpu: 0.0.40
codegen_flags: <defaults>
</compile_context>

<pallas_src>
import jax
import jax.numpy as jnp
from jax.experimental import pallas as pl
from jax.experimental.pallas import tpu as pltpu


# ----------------------------------------------------------------------------
# Fused sin/cos with a single shared range reduction (f32, |err| ~ 1e-7).
# ----------------------------------------------------------------------------
_TWO_OVER_PI = 0.6366197723675814
# 3-part Cody-Waite split of pi/2 (f32-exact high parts).
_PIO2_A = 1.5703125
_PIO2_B = 4.8351287841796875e-4
_PIO2_C = 3.13855707645416259765625e-7


def _sincos(x):
    """Returns (sin(x), cos(x)) for f32 x, sharing one range reduction."""
    q = jnp.round(x * _TWO_OVER_PI)            # nearest multiple of pi/2
    r = x - q * _PIO2_A
    r = r - q * _PIO2_B
    r = r - q * _PIO2_C                        # r in ~[-pi/4, pi/4]
    qi = q.astype(jnp.int32)

    r2 = r * r
    # sin polynomial (cephes sinf), valid on |r| <= pi/4
    ps = jnp.float32(-1.9515295891e-4)
    ps = ps * r2 + jnp.float32(8.3321608736e-3)
    ps = ps * r2 + jnp.float32(-1.6666654611e-1)
    s = r + r * r2 * ps
    # cos polynomial (cephes cosf)
    pc = jnp.float32(2.443315711809948e-5)
    pc = pc * r2 + jnp.float32(-1.388731625493765e-3)
    pc = pc * r2 + jnp.float32(4.166664568298827e-2)
    c = 1.0 - 0.5 * r2 + (r2 * r2) * pc

    # Quadrant fix-up (k = q mod 4): swap when k odd, negate per quadrant.
    swap = (qi & 1) == 1
    sin_v = jnp.where(swap, c, s)
    cos_v = jnp.where(swap, s, c)
    sin_v = jnp.where((qi & 2) != 0, -sin_v, sin_v)
    cos_v = jnp.where(((qi + 1) & 2) != 0, -cos_v, cos_v)
    return sin_v, cos_v


def _pos_emb_kernel(pos_ref, freq_ref, out_ref):
    # pos_ref  : [TILE_R, 1]            flattened seq-major position rows
    # freq_ref : [1, d_half_pad]        inverse frequencies (zero-padded lanes)
    # out_ref  : [TILE_R, 2*d_half_pad] [sin half | cos half]
    d_half = freq_ref.shape[1]
    pos = pos_ref[...].astype(jnp.float32)     # [TILE_R, 1]
    freq = freq_ref[...].astype(jnp.float32)   # [1, d_half]
    x = pos * freq                             # broadcast -> [TILE_R, d_half]
    s, c = _sincos(x)                          # single shared range reduction
    # Two direct lane-dense half-stores (no concatenate, no extra VMEM buffer).
    out_ref[:, :d_half] = s.astype(out_ref.dtype)
    out_ref[:, d_half:] = c.astype(out_ref.dtype)


def _choose_tile_rows(n_rows, row_bytes, target_bytes=None, min_tiles=8):
    """Row tile: multiple of 8, VMEM-aware, and small enough for >= min_tiles
    grid steps so megacore (v7x) actually gets work on both cores."""
    if n_rows <= 8:
        return max(1, n_rows)
    if target_bytes is None:
        try:
            vmem_bytes = pltpu.get_tpu_info().vmem_capacity_bytes
        except Exception:  # e.g. CPU interpret / older runtime
            vmem_bytes = 64 * 1024 * 1024          # assume worst case (v7x)
        # ~1/16 of physical VMEM per output buffer, capped at 8 MiB:
        # v7x (64 MiB) -> 4 MiB, v5e/v6e (128 MiB) -> 8 MiB.
        target_bytes = max(512 * 1024, min(8 * 1024 * 1024, vmem_bytes // 16))
    t = max(8, (target_bytes // max(1, row_bytes) // 8) * 8)
    # Cap so the grid has at least `min_tiles` steps (rounded to sublanes).
    cap = -(-n_rows // min_tiles)
    cap = max(8, -(-cap // 8) * 8)
    t = min(t, cap)
    t = min(t, -(-n_rows // 8) * 8)
    return t


def positional_embedding(pos_seq, inverse_freq, tile_rows=None,
                         batch_invariant=False):
    """pos_seq: [B, L], inverse_freq: [d_half] -> [L, B, 2*d_half].

    batch_invariant=True: pos_seq rows are identical across the batch (the
    standard Transformer-XL case); compute sin/cos once per position and
    broadcast over B (B x less VALU work in a compute-bound kernel).
    """
    B, L = pos_seq.shape
    d_half = inverse_freq.shape[0]
    d_model = 2 * d_half
    out_dtype = pos_seq.dtype

    # Pad each half up to a multiple of 128 lanes so both stores are unmasked.
    # Padded freqs are 0 -> sin=0 / cos=1 in the pad region, sliced off below.
    d_half_pad = max(128, ((d_half + 127) // 128) * 128)

    # --- wrapper-side layout plumbing (cheap, one-time XLA ops) -------------
    if batch_invariant:
        pos_rows = pos_seq[0].reshape(L, 1)
        n_rows = L
    else:
        # seq-major rows: row r = (i = r // B, b = r % B), matching 'ibj'.
        pos_rows = jnp.transpose(pos_seq).reshape(L * B, 1)
        n_rows = L * B

    freq2d = inverse_freq.reshape(1, d_half).astype(jnp.float32)
    if d_half_pad != d_half:
        freq2d = jnp.pad(freq2d, ((0, 0), (0, d_half_pad - d_half)))

    row_bytes = jnp.dtype(out_dtype).itemsize * 2 * d_half_pad
    if tile_rows is None:
        tile_rows = _choose_tile_rows(n_rows, row_bytes)
    tile_rows = max(1, min(tile_rows, n_rows))

    # Pad rows to a multiple of the tile so every block is full (no masked
    # partial tiles); the pad is sliced off afterwards.
    n_rows_pad = -(-n_rows // tile_rows) * tile_rows
    if n_rows_pad != n_rows:
        pos_rows = jnp.pad(pos_rows, ((0, n_rows_pad - n_rows), (0, 0)))

    grid = (n_rows_pad // tile_rows,)

    cost = pl.CostEstimate(
        flops=30 * n_rows_pad * d_half_pad,   # polynomial sincos (VALU), advisory
        transcendentals=0,
        bytes_accessed=(
            pos_rows.size * pos_rows.dtype.itemsize
            + freq2d.size * freq2d.dtype.itemsize
            + n_rows_pad * 2 * d_half_pad * jnp.dtype(out_dtype).itemsize
        ),
    )

    out2d = pl.pallas_call(
        _pos_emb_kernel,
        out_shape=jax.ShapeDtypeStruct((n_rows_pad, 2 * d_half_pad), out_dtype),
        grid=grid,
        in_specs=[
            pl.BlockSpec((tile_rows, 1), lambda i: (i, 0)),        # pos rows
            pl.BlockSpec((1, d_half_pad), lambda i: (0, 0)),       # inv freq
        ],
        out_specs=pl.BlockSpec((tile_rows, 2 * d_half_pad), lambda i: (i, 0)),
        compiler_params=pltpu.CompilerParams(
            dimension_semantics=("parallel",),
        ),
        cost_estimate=cost,
    )(pos_rows, freq2d)

    out2d = out2d[:n_rows]
    if d_half_pad != d_half:
        out2d = jnp.concatenate(
            [out2d[:, :d_half], out2d[:, d_half_pad:d_half_pad + d_half]],
            axis=-1)

    if batch_invariant:
        return jnp.broadcast_to(out2d.reshape(L, 1, d_model), (L, B, d_model))
    return out2d.reshape(L, B, d_model)


def positional_embedding_ref(pos_seq, inverse_freq):
    sinusoid = jnp.einsum('bi,j->ibj', pos_seq, inverse_freq)
    return jnp.concatenate([jnp.sin(sinusoid), jnp.cos(sinusoid)], axis=-1)


if __name__ == "__main__":
    key = jax.random.PRNGKey(0)

    # Case 1: lane-dense d_model (d_half = 128 -> no lane padding).
    B, L, d_model = 2, 8, 256
    inv_freq = (1.0 / (10000.0 ** (jnp.arange(0.0, d_model, 2.0) / d_model)))
    inv_freq = inv_freq.astype(jnp.float32)
    pos_seq = jax.random.uniform(key, (B, L), dtype=jnp.float32,
                                 minval=-float(L), maxval=float(L))
    out = jax.block_until_ready(positional_embedding(pos_seq, inv_freq))
    ref = positional_embedding_ref(pos_seq, inv_freq)
    assert out.shape == (L, B, d_model), out.shape
    assert jnp.allclose(out, ref, atol=1e-5, rtol=1e-5), "mismatch (d_model=256)"

    # Case 2: narrow d_model=32 (exercises the lane-padded store path).
    d_model2 = 32
    inv2 = (1.0 / (10000.0 ** (jnp.arange(0.0, d_model2, 2.0) / d_model2)))
    inv2 = inv2.astype(jnp.float32)
    out2 = jax.block_until_ready(positional_embedding(pos_seq, inv2))
    ref2 = positional_embedding_ref(pos_seq, inv2)
    assert out2.shape == (L, B, d_model2), out2.shape
    assert jnp.allclose(out2, ref2, atol=1e-5, rtol=1e-5), "mismatch (d_model=32)"

    # Case 3: batch-invariant dedupe path (Transformer-XL style positions).
    pos_xl = jnp.broadcast_to(
        jnp.arange(L - 1, -1, -1, dtype=jnp.float32)[None, :], (B, L))
    out3 = jax.block_until_ready(
        positional_embedding(pos_xl, inv_freq, batch_invariant=True))
    ref3 = positional_embedding_ref(pos_xl, inv_freq)
    assert jnp.allclose(out3, ref3, atol=1e-5, rtol=1e-5), "mismatch (dedupe)"

    print("KERNEL_OK")
</pallas_src>

<mosaic_0001>
module attributes {stable_mosaic.version = 11 : i64} {
  func.func @_pos_emb_kernel(%arg0: i32, %arg1: memref<8x1xf32, #tpu.memory_space<vmem>>, %arg2: memref<1x128xf32, #tpu.memory_space<vmem>>, %arg3: memref<8x256xf32, #tpu.memory_space<vmem>>) attributes {dimension_semantics = [#tpu.dimension_semantics<parallel>], iteration_bounds = array<i64: 2>, scalar_prefetch = 0 : i64, scratch_operands = 0 : i64, tpu.core_type = #tpu.core_type<tc>, window_params = [{transform_indices = @transform_0, window_bounds = array<i64: 8, 1>}, {pipeline_mode = #tpu.pipeline_mode<synchronous>, transform_indices = @transform_1, window_bounds = array<i64: 1, 128>}, {transform_indices = @transform_2, window_bounds = array<i64: 8, 256>}]} {
    %c0 = arith.constant 0 : index
    %c0_0 = arith.constant 0 : index
    %0 = vector.load %arg1[%c0, %c0_0] : memref<8x1xf32, #tpu.memory_space<vmem>>, vector<8x1xf32>
    %c0_1 = arith.constant 0 : index
    %c0_2 = arith.constant 0 : index
    %1 = vector.load %arg2[%c0_1, %c0_2] : memref<1x128xf32, #tpu.memory_space<vmem>>, vector<1x128xf32>
    %2 = vector.broadcast %0 : vector<8x1xf32> to vector<8x128xf32>
    %3 = vector.broadcast %1 : vector<1x128xf32> to vector<8x128xf32>
    %4 = arith.mulf %2, %3 : vector<8x128xf32>
    %cst = arith.constant 0.636619746 : f32
    %5 = vector.broadcast %cst : f32 to vector<8x128xf32>
    %6 = arith.mulf %4, %5 : vector<8x128xf32>
    %7 = math.roundeven %6 : vector<8x128xf32>
    %cst_3 = arith.constant 1.5703125 : f32
    %8 = vector.broadcast %cst_3 : f32 to vector<8x128xf32>
    %9 = arith.mulf %7, %8 : vector<8x128xf32>
    %10 = arith.subf %4, %9 : vector<8x128xf32>
    %cst_4 = arith.constant 4.83512878E-4 : f32
    %11 = vector.broadcast %cst_4 : f32 to vector<8x128xf32>
    %12 = arith.mulf %7, %11 : vector<8x128xf32>
    %13 = arith.subf %10, %12 : vector<8x128xf32>
    %cst_5 = arith.constant 3.13855708E-7 : f32
    %14 = vector.broadcast %cst_5 : f32 to vector<8x128xf32>
    %15 = arith.mulf %7, %14 : vector<8x128xf32>
    %16 = arith.subf %13, %15 : vector<8x128xf32>
    %17 = arith.fptosi %7 : vector<8x128xf32> to vector<8x128xi32>
    %18 = arith.mulf %16, %16 : vector<8x128xf32>
    %cst_6 = arith.constant -1.95152956E-4 : f32
    %19 = vector.broadcast %cst_6 : f32 to vector<8x128xf32>
    %20 = arith.mulf %19, %18 : vector<8x128xf32>
    %cst_7 = arith.constant 0.00833216123 : f32
    %21 = vector.broadcast %cst_7 : f32 to vector<8x128xf32>
    %22 = arith.addf %20, %21 : vector<8x128xf32>
    %23 = arith.mulf %22, %18 : vector<8x128xf32>
    %cst_8 = arith.constant -0.166666552 : f32
    %24 = vector.broadcast %cst_8 : f32 to vector<8x128xf32>
    %25 = arith.addf %23, %24 : vector<8x128xf32>
    %26 = arith.mulf %16, %18 : vector<8x128xf32>
    %27 = arith.mulf %26, %25 : vector<8x128xf32>
    %28 = arith.addf %16, %27 : vector<8x128xf32>
    %cst_9 = arith.constant 2.44331568E-5 : f32
    %29 = vector.broadcast %cst_9 : f32 to vector<8x128xf32>
    %30 = arith.mulf %29, %18 : vector<8x128xf32>
    %cst_10 = arith.constant -0.00138873165 : f32
    %31 = vector.broadcast %cst_10 : f32 to vector<8x128xf32>
    %32 = arith.addf %30, %31 : vector<8x128xf32>
    %33 = arith.mulf %32, %18 : vector<8x128xf32>
    %cst_11 = arith.constant 0.0416666456 : f32
    %34 = vector.broadcast %cst_11 : f32 to vector<8x128xf32>
    %35 = arith.addf %33, %34 : vector<8x128xf32>
    %cst_12 = arith.constant 5.000000e-01 : f32
    %36 = vector.broadcast %cst_12 : f32 to vector<8x128xf32>
    %37 = arith.mulf %36, %18 : vector<8x128xf32>
    %cst_13 = arith.constant 1.000000e+00 : f32
    %38 = vector.broadcast %cst_13 : f32 to vector<8x128xf32>
    %39 = arith.subf %38, %37 : vector<8x128xf32>
    %40 = arith.mulf %18, %18 : vector<8x128xf32>
    %41 = arith.mulf %40, %35 : vector<8x128xf32>
    %42 = arith.addf %39, %41 : vector<8x128xf32>
    %c1_i32 = arith.constant 1 : i32
    %43 = vector.broadcast %c1_i32 : i32 to vector<8x128xi32>
    %44 = arith.andi %17, %43 : vector<8x128xi32>
    %c1_i32_14 = arith.constant 1 : i32
    %45 = vector.broadcast %c1_i32_14 : i32 to vector<8x128xi32>
    %46 = arith.cmpi eq, %44, %45 : vector<8x128xi32>
    %47 = arith.select %46, %42, %28 : vector<8x128xi1>, vector<8x128xf32>
    %48 = arith.select %46, %28, %42 : vector<8x128xi1>, vector<8x128xf32>
    %c2_i32 = arith.constant 2 : i32
    %49 = vector.broadcast %c2_i32 : i32 to vector<8x128xi32>
    %50 = arith.andi %17, %49 : vector<8x128xi32>
    %c0_i32 = arith.constant 0 : i32
    %51 = vector.broadcast %c0_i32 : i32 to vector<8x128xi32>
    %52 = arith.cmpi ne, %50, %51 : vector<8x128xi32>
    %cst_15 = arith.constant 0.000000e+00 : f32
    %53 = vector.broadcast %cst_15 : f32 to vector<8x128xf32>
    %54 = arith.subf %53, %47 : vector<8x128xf32>
    %55 = arith.select %52, %54, %47 : vector<8x128xi1>, vector<8x128xf32>
    %c1_i32_16 = arith.constant 1 : i32
    %56 = vector.broadcast %c1_i32_16 : i32 to vector<8x128xi32>
    %57 = arith.addi %17, %56 : vector<8x128xi32>
    %c2_i32_17 = arith.constant 2 : i32
    %58 = vector.broadcast %c2_i32_17 : i32 to vector<8x128xi32>
    %59 = arith.andi %57, %58 : vector<8x128xi32>
    %c0_i32_18 = arith.constant 0 : i32
    %60 = vector.broadcast %c0_i32_18 : i32 to vector<8x128xi32>
    %61 = arith.cmpi ne, %59, %60 : vector<8x128xi32>
    %cst_19 = arith.constant 0.000000e+00 : f32
    %62 = vector.broadcast %cst_19 : f32 to vector<8x128xf32>
    %63 = arith.subf %62, %48 : vector<8x128xf32>
    %64 = arith.select %61, %63, %48 : vector<8x128xi1>, vector<8x128xf32>
    %c0_20 = arith.constant 0 : index
    %c0_21 = arith.constant 0 : index
    %65 = vector.load %arg3[%c0_20, %c0_21] : memref<8x256xf32, #tpu.memory_space<vmem>>, vector<8x128xf32>
    tpu.vector_store %arg3[%c0_20, %c0_21], %55 {strides = array<i32>} : memref<8x256xf32, #tpu.memory_space<vmem>>, vector<8x128xf32>,
    %c0_22 = arith.constant 0 : index
    %c128 = arith.constant 128 : index
    %66 = vector.load %arg3[%c0_22, %c128] : memref<8x256xf32, #tpu.memory_space<vmem>>, vector<8x128xf32>
    tpu.vector_store %arg3[%c0_22, %c128], %64 {strides = array<i32>} : memref<8x256xf32, #tpu.memory_space<vmem>>, vector<8x128xf32>,
    return
  }
  func.func @transform_0(%arg0: i32) -> (i32, i32) {
    %c0_i32 = arith.constant 0 : i32
    %c0_i32_0 = arith.constant 0 : i32
    return %arg0, %c0_i32 : i32, i32
  }
  func.func @transform_1(%arg0: i32) -> (i32, i32) {
    %c0_i32 = arith.constant 0 : i32
    %c0_i32_0 = arith.constant 0 : i32
    %c0_i32_1 = arith.constant 0 : i32
    return %c0_i32, %c0_i32_0 : i32, i32
  }
  func.func @transform_2(%arg0: i32) -> (i32, i32) {
    %c0_i32 = arith.constant 0 : i32
    %c0_i32_0 = arith.constant 0 : i32
    return %arg0, %c0_i32 : i32, i32
  }
}

</mosaic_0001>

<llo_original>
// kernel: tpu_custom_call.1
$region0: #{tpu_custom_call.1}
  #allocation0 [shape = 'u32[]', space=smem, size = 0x4, offset = 0x4, fixed_abs, tag = 'smem constant byte address 0x4 - core index']
  #allocation1 [shape = 'u32[144,128]{1,0:T(1,128)}', space=vmem, size = 0x12000, scoped, tag = 'internal scratch']
  %s0 = inlined_call_operand.vmem [shape: f32[16,1], index: 0, kind: input, shape index: {}]
  %s1 = inlined_call_operand.vmem [shape: f32[1,128], index: 1, kind: input, shape index: {}]
  %s2 = inlined_call_operand.hbm [shape: f32[16,256], index: 2, kind: output, shape index: {}]
  %s3 = sld [smem:[#allocation0]]
  $region41: #{tpu_custom_call.1} parent=0
    _
  %s5 = ssub.s32 1, %s3
  %s6 = scalar_select 0, %s5, %s3
  $region1: #{tpu_custom_call.1} parent=0
    #allocation2 [shape = 'u8[16384]{0}', space=vmem, size = 0x4000, scoped, tag = 'output window, operand 0']
    #allocation3 [shape = 's32[2]{0}', space=sflag, size = 0x8, scoped, tag = 'scoped memory for tpu_custom_call.1']
    %7 = vsyncpa [#allocation3], 0
    %s8 = scalar_lea.sflag [#allocation3], 1
    %9 = vsyncpa %s8, 0
    loop: start=0, step=1, limit=4
    $region2: #{tpu_custom_call.1} parent=1 // loop_pre_header
      _
    $region3: #{tpu_custom_call.1} parent=1 // loop_header
      %s11 = sphi 0, %s15
      %p12 = scmp.ge.s32.totalorder %s11, 4
      %s21 = sphi 0, %s23
      %s24 = sphi 0, %s21
      %s25 = sphi 0, %s24
      %s41 = sphi 0, %s25
      %s45 = sphi 0, %s45
      %s47 = sphi 0, %s45
      %s48 = sphi 0, %s47
      %s62 = sphi 0, %s48
      %s68 = sphi 0, %s70
      %s71 = sphi 0, %s68
      %s72 = sphi 0, %s71
      %s88 = sphi 0, %s72
    $region4: #{tpu_custom_call.1} parent=1 // loop_header_branch
      %14 = sbr.rel (%p12) target = $region8
    $region5: #{tpu_custom_call.1} parent=1 // loop_body
      %s16 = ssub.s32 %s11, 1
      %s17 = ssub.s32 %s11, 2
      %s18 = sadd.s32 %s11, 1
      %s19 = ssub.s32 %s11, %s18
      %p20 = scmp.eq.s32.totalorder %s19, 0
      %s22 = sadd.s32 %s21, 1
      %s23 = scalar_select %p20, %s21, %s22
      %p26 = pneg %p20
      %p27 = scmp.eq.s32.totalorder %s11, 1
      %p28 = por %p26, %p27
      %p29 = scmp.ne.s32.totalorder %s21, %s24
      %p30 = scmp.eq.s32.totalorder %s11, 0
      %p31 = por %p29, %p30
      %p32 = scmp.ne.s32.totalorder %s21, %s24
      %p33 = scmp.eq.s32.totalorder %s16, 1
      %p34 = por %p32, %p33
      %p35 = scmp.ne.s32.totalorder %s24, %s25
      %p36 = scmp.eq.s32.totalorder %s16, 0
      %p37 = por %p35, %p36
      %p38 = scmp.ne.s32.totalorder %s24, %s25
      %p39 = scmp.eq.s32.totalorder %s17, 1
      %p40 = por %p38, %p39
      %p42 = scmp.ne.s32.totalorder %s25, %s41
      %p43 = scmp.eq.s32.totalorder %s17, 0
      %p44 = por %p42, %p43
      %s46 = sadd.s32 %s45, 1
      %p49 = scmp.eq.s32.totalorder %s11, 1
      %p50 = scmp.ne.s32.totalorder %s45, %s47
      %p51 = scmp.eq.s32.totalorder %s11, 0
      %p52 = por %p50, %p51
      %p53 = scmp.ne.s32.totalorder %s45, %s47
      %p54 = scmp.eq.s32.totalorder %s16, 1
      %p55 = por %p53, %p54
      %p56 = scmp.ne.s32.totalorder %s47, %s48
      %p57 = scmp.eq.s32.totalorder %s16, 0
      %p58 = por %p56, %p57
      %p59 = scmp.ne.s32.totalorder %s47, %s48
      %p60 = scmp.eq.s32.totalorder %s17, 1
      %p61 = por %p59, %p60
      %p63 = scmp.ne.s32.totalorder %s48, %s62
      %p64 = scmp.eq.s32.totalorder %s17, 0
      %p65 = por %p63, %p64
      %s66 = ssub.s32 %s11, %s18
      %p67 = scmp.eq.s32.totalorder %s66, 0
      %s69 = sadd.s32 %s68, 1
      %s70 = scalar_select %p67, %s68, %s69
      %p73 = pneg %p67
      %p74 = scmp.eq.s32.totalorder %s11, 1
      %p75 = por %p73, %p74
      %p76 = scmp.ne.s32.totalorder %s68, %s71
      %p77 = scmp.eq.s32.totalorder %s11, 0
      %p78 = por %p76, %p77
      %p79 = scmp.ne.s32.totalorder %s68, %s71
      %p80 = scmp.eq.s32.totalorder %s16, 1
      %p81 = por %p79, %p80
      %p82 = scmp.ne.s32.totalorder %s71, %s72
      %p83 = scmp.eq.s32.totalorder %s16, 0
      %p84 = por %p82, %p83
      %p85 = scmp.ne.s32.totalorder %s71, %s72
      %p86 = scmp.eq.s32.totalorder %s17, 1
      %p87 = por %p85, %p86
      %p89 = scmp.ne.s32.totalorder %s72, %s88
      %p90 = scmp.eq.s32.totalorder %s17, 0
      %p91 = por %p89, %p90
      %p92 = scmp.le.s32.totalorder 1, %s11
      %p93 = scmp.lt.s32.totalorder %s11, 3
      %p94 = pnand %p92, %p93
      %p95 = pneg %p94
      // Predicated region
      $region9: #{tpu_custom_call.1} parent=5 // pred_check
        _
      $region10: #{tpu_custom_call.1} parent=5 // pred_check_branch
        %97 = sbr.rel (%p94) target = $region12
      $region11: #{tpu_custom_call.1} parent=5 // pred_region
        %s98 = ssub.s32 %s11, 1
        // Predicated region
        $region13: #{tpu_custom_call.1} parent=11 // pred_check
          %p99 = pneg %p58
        $region14: #{tpu_custom_call.1} parent=11 // pred_check_branch
          %101 = sbr.rel (%p99) target = $region16
        $region15: #{tpu_custom_call.1} parent=11 // pred_region
          _
        $region16: #{tpu_custom_call.1} parent=11 // pred_fallthru
          _
      $region12: #{tpu_custom_call.1} parent=5 // pred_fallthru
        _
      %p102 = scmp.lt.s32.totalorder %s11, 2
      // Predicated region
      $region17: #{tpu_custom_call.1} parent=5 // pred_check
        %p103 = pneg %p102
      $region18: #{tpu_custom_call.1} parent=5 // pred_check_branch
        %105 = sbr.rel (%p103) target = $region20
      $region19: #{tpu_custom_call.1} parent=5 // pred_region
        // Predicated region
        $region21: #{tpu_custom_call.1} parent=19 // pred_check
          %p106 = pneg %p31
        $region22: #{tpu_custom_call.1} parent=19 // pred_check_branch
          %108 = sbr.rel (%p106) target = $region24
        $region23: #{tpu_custom_call.1} parent=19 // pred_region
          %p109 = scmp.lt.s32.totalorder %s11, 1
          %s110 = scalar_select %p109, %s11, 1
          %s111 = smul.addr %s110, 8
          %s112 = scalar_lea.vmem %s0, %s111
        $region24: #{tpu_custom_call.1} parent=19 // pred_fallthru
          _
      $region20: #{tpu_custom_call.1} parent=5 // pred_fallthru
        _
      %p113 = scmp.le.s32.totalorder 1, %s11
      %p114 = scmp.lt.s32.totalorder %s11, 3
      %p115 = pnand %p113, %p114
      %p116 = pneg %p115
      // Predicated region
      $region25: #{tpu_custom_call.1} parent=5 // pred_check
        _
      $region26: #{tpu_custom_call.1} parent=5 // pred_check_branch
        %118 = sbr.rel (%p115) target = $region28
      $region27: #{tpu_custom_call.1} parent=5 // pred_region
        %s119 = ssub.s32 %s11, 1
        %p120 = scmp.lt.s32.totalorder %s16, 1
        %s121 = scalar_select %p120, %s16, 1
        %s122 = smul.addr %s121, 8
        %s123 = scalar_lea.vmem %s0, %s122
        %p124 = pneg %p37
        %p125 = pneg %p34
        %p126 = pneg %p58
        %p127 = pneg %p55
        %p128 = pneg %p84
        %p129 = pneg %p81
        %s130 = sand.u32 %s71, 1
        %s131 = scalar_lea.sflag [#allocation3], %s130
        %s132 = sand.u32 %s71, 1
        %s133 = smul.addr %s132, 16
        %s134 = scalar_lea.vmem [#allocation2], %s133
        %p135 = scmp.lt.s32.totalorder %s16, 1
        %s136 = scalar_select %p135, %s16, 1
        %s137 = smul.addr %s136, 8
        %s138 = scalar_lea.vmem %s0, %s137
        %v139 = vld [vmem:[%s138] sm:$0xff]
        %v140 = vld [vmem:[%s1] sm:$0x1]
        %142 = vset.pattern.permute.xlu0 0
        %143 = vperm.xlu0 %142, %v139
        %v144 = vpop.permute.xlu0 %143
        %v147 = vlaneseq
        %v148 = vshrl.u32 %v147, 7
        %v149 = vsub.s32 0, %v148
        %v150 = vrot.slane %v140, %v149
        %v152 = vmul.f32 %v144, %v150
        %v153 = vmul.f32 %v152, 0.63661975
        %v154 = vround.ne.pseudo %v153
        %v155 = vmul.f32 %v154, 1.5703125
        %v156 = vsub.f32 %v152, %v155
        %v157 = vmul.f32 %v154, 0.00048351288
        %v158 = vsub.f32 %v156, %v157
        %v159 = vmul.f32 %v154, 3.138557e-07
        %v160 = vsub.f32 %v158, %v159
        %v161 = vcvt.f32.s32.ties.to.even %v153
        %v162 = vmul.f32 %v160, %v160
        %v163 = vmul.f32 %v162, -0.00019515296
        %v164 = vadd.f32 %v163, 0.008332161
        %v165 = vmul.f32 %v164, %v162
        %v166 = vadd.f32 %v165, -0.16666655
        %v167 = vmul.f32 %v160, %v162
        %v168 = vmul.f32 %v167, %v166
        %v169 = vadd.f32 %v160, %v168
        %v170 = vmul.f32 %v162, 2.4433157e-05
        %v171 = vadd.f32 %v170, -0.0013887316
        %v172 = vmul.f32 %v171, %v162
        %v173 = vadd.f32 %v172, 0.041666646
        %v174 = vmul.f32 %v162, 0.5
        %v175 = vsub.f32 1.0, %v174
        %v176 = vmul.f32 %v162, %v162
        %v177 = vmul.f32 %v176, %v173
        %v178 = vadd.f32 %v175, %v177
        %v179 = vand.u32 %v161, 1
        %vm180 = vcmp.eq.s32.totalorder %v179, 1
        %v181 = vsel %vm180, %v178, %v169
        %v182 = vsel %vm180, %v169, %v178
        %v183 = vand.u32 %v161, 2
        %vm184 = vcmp.ne.s32.totalorder %v183, 0
        %v185 = vsub.f32 0.0, %v181
        %v186 = vsel %vm184, %v185, %v181
        %v187 = vadd.s32 %v161, 1
        %v188 = vand.u32 %v187, 2
        %vm189 = vcmp.ne.s32.totalorder %v188, 0
        %v190 = vsub.f32 0.0, %v182
        %v191 = vsel %vm189, %v190, %v182
        %192 = vst [vmem:[%s134] sm:$0xff] %v186
        %193 = vst [vmem:[%s134 + $0x8] sm:$0xff] %v191
        %s194 = sand.u32 %s71, 1
        %s195 = scalar_lea.sflag [#allocation3], %s194
        %s196 = sand.u32 %s71, 1
        %s197 = smul.addr %s196, 16
        %s198 = scalar_lea.vmem [#allocation2], %s197
        // Predicated region
        $region29: #{tpu_custom_call.1} parent=27 // pred_check
          %p199 = pneg %p81
        $region30: #{tpu_custom_call.1} parent=27 // pred_check_branch
          %201 = sbr.rel (%p199) target = $region32
        $region31: #{tpu_custom_call.1} parent=27 // pred_region
          %s203 = ssub.s32 256, 256
          %204 = vsyncadd %s195, %s203
          %s205 = smul.addr %s16, 2
          %s206 = smul.addr %s205, 128
          %s207 = scalar_lea.hbm %s2, %s206
          %s209 = sshll.u32 %s198, 4
          %s210 = int_to_ptr.vmem [resolvable:$true] %s209
          %212 = dma.vmem_to_hbm [thread:$0]  %s210, 256, %s207, %s195
        $region32: #{tpu_custom_call.1} parent=27 // pred_fallthru
          _
      $region28: #{tpu_custom_call.1} parent=5 // pred_fallthru
        _
      %p213 = scmp.le.s32.totalorder 2, %s11
      // Predicated region
      $region33: #{tpu_custom_call.1} parent=5 // pred_check
        %p214 = pneg %p213
      $region34: #{tpu_custom_call.1} parent=5 // pred_check_branch
        %216 = sbr.rel (%p214) target = $region36
      $region35: #{tpu_custom_call.1} parent=5 // pred_region
        %s217 = ssub.s32 %s11, 2
        // Predicated region
        $region37: #{tpu_custom_call.1} parent=35 // pred_check
          %p218 = pneg %p87
        $region38: #{tpu_custom_call.1} parent=35 // pred_check_branch
          %220 = sbr.rel (%p218) target = $region40
        $region39: #{tpu_custom_call.1} parent=35 // pred_region
          %s221 = sand.u32 %s72, 1
          %s222 = scalar_lea.sflag [#allocation3], %s221
          %s223 = sand.u32 %s72, 1
          %s224 = smul.addr %s223, 16
          %s225 = scalar_lea.vmem [#allocation2], %s224
          %226 = dma.done %s222, 256
        $region40: #{tpu_custom_call.1} parent=35 // pred_fallthru
          _
      $region36: #{tpu_custom_call.1} parent=5 // pred_fallthru
        _
    $region6: #{tpu_custom_call.1} parent=1 // loop_footer
      %s15 = sadd.s32 1, %s11
    $region7: #{tpu_custom_call.1} parent=1 // loop_footer_branch
      %10 = sbr.rel target = $region3
    $region8: #{tpu_custom_call.1} parent=1 // loop_exit
      _
    %227 = vsyncpa [#allocation3], 1
    %s228 = scalar_lea.sflag [#allocation3], 1
    %229 = vsyncpa %s228, 1

</llo_original>
